<compile_context>
chip_gen: v5e
topology: v5e:2x2
jax: 0.10.0
libtpu: 0.0.40
codegen_flags: <defaults>
</compile_context>

<pallas_src>
import math
import functools

import jax
import jax.numpy as jnp
from jax.experimental import pallas as pl
from jax.experimental.pallas import tpu as pltpu


# ----------------------------- Pallas kernel -------------------------------

def _pe_add_kernel(x_ref, pe_ref, o_ref):
    # x_ref / o_ref: (T, D) slab of one batch element (batch dim squeezed).
    # pe_ref:        (T, D) positional-encoding table (shared across batches).
    o_ref[...] = x_ref[...] + pe_ref[...]


def positional_encoding_forward(x, pe):
    """Text_PositionalEncoding.forward: x + pe[:T]; dropout = identity (eval).

    x:  (B, T, D) activations
    pe: (max_len, D) sinusoidal table (the registered buffer)
    """
    B, T, D = x.shape
    pe_t = pe[:T, :]  # static slice of the buffer, done once in the wrapper

    return pl.pallas_call(
        _pe_add_kernel,
        out_shape=jax.ShapeDtypeStruct((B, T, D), x.dtype),
        grid=(B,),
        in_specs=[
            # batch dim squeezed -> kernel sees a lane-dense (T, D) tile
            pl.BlockSpec((None, T, D), lambda b: (b, 0, 0)),
            # same (T, D) table block for every grid step (resident in VMEM)
            pl.BlockSpec((T, D), lambda b: (0, 0)),
        ],
        out_specs=pl.BlockSpec((None, T, D), lambda b: (b, 0, 0)),
        compiler_params=pltpu.CompilerParams(
            dimension_semantics=("parallel",)),
    )(x, pe_t)


# --------------------------- buffer construction ---------------------------

def make_positional_encoding(max_len, d_model):
    """Same construction as the PyTorch __init__ (sin on even, cos on odd)."""
    position = jnp.arange(max_len, dtype=jnp.float32)[:, None]
    div_term = jnp.exp(jnp.arange(0, d_model, 2, dtype=jnp.float32)
                       * (-math.log(10000.0) / d_model))
    pe = jnp.zeros((max_len, d_model), jnp.float32)
    pe = pe.at[:, 0::2].set(jnp.sin(position * div_term))
    pe = pe.at[:, 1::2].set(jnp.cos(position * div_term))
    return pe


# --------------------------------- main -------------------------------------

if __name__ == "__main__":
    B, T, D_MODEL = 2, 8, 128
    MAX_LEN = 64

    key = jax.random.PRNGKey(0)
    x = jax.random.normal(key, (B, T, D_MODEL), jnp.float32)
    pe = make_positional_encoding(MAX_LEN, D_MODEL)

    # Dropout is identity in eval mode (the PyTorch module under .eval()).
    # TODO(synk): training-mode dropout would need pltpu.prng_* inside the
    # kernel; not part of the eval forward pass.
    fwd = jax.jit(positional_encoding_forward)
    out = fwd(x, pe)
    out = jax.block_until_ready(out)

    # Pure-JAX reference check.
    ref = x + pe[None, :T, :]
    assert out.shape == (B, T, D_MODEL)
    assert bool(jnp.all(jnp.isfinite(out)))
    assert bool(jnp.allclose(out, ref, atol=1e-6, rtol=1e-6))
    print("KERNEL_OK")
</pallas_src>

<mosaic_0001>
module attributes {stable_mosaic.version = 11 : i64} {
  func.func @_pe_add_kernel(%arg0: i32, %arg1: memref<1x8x128xf32, #tpu.memory_space<vmem>>, %arg2: memref<8x128xf32, #tpu.memory_space<vmem>>, %arg3: memref<1x8x128xf32, #tpu.memory_space<vmem>>) attributes {dimension_semantics = [#tpu.dimension_semantics<parallel>], iteration_bounds = array<i64: 2>, scalar_prefetch = 0 : i64, scratch_operands = 0 : i64, tpu.core_type = #tpu.core_type<tc>, window_params = [{transform_indices = @transform_0, window_bounds = array<i64: 1, 8, 128>}, {pipeline_mode = #tpu.pipeline_mode<synchronous>, transform_indices = @transform_1, window_bounds = array<i64: 8, 128>}, {transform_indices = @transform_2, window_bounds = array<i64: 1, 8, 128>}]} {
    %c0 = arith.constant 0 : index
    %c0_0 = arith.constant 0 : index
    %c0_1 = arith.constant 0 : index
    %0 = vector.load %arg1[%c0, %c0_0, %c0_1] : memref<1x8x128xf32, #tpu.memory_space<vmem>>, vector<1x8x128xf32>
    %1 = vector.shape_cast %0 : vector<1x8x128xf32> to vector<8x128xf32>
    %c0_2 = arith.constant 0 : index
    %c0_3 = arith.constant 0 : index
    %2 = vector.load %arg2[%c0_2, %c0_3] : memref<8x128xf32, #tpu.memory_space<vmem>>, vector<8x128xf32>
    %3 = arith.addf %1, %2 : vector<8x128xf32>
    %c0_4 = arith.constant 0 : index
    %c0_5 = arith.constant 0 : index
    %c0_6 = arith.constant 0 : index
    %4 = vector.load %arg3[%c0_4, %c0_5, %c0_6] : memref<1x8x128xf32, #tpu.memory_space<vmem>>, vector<1x8x128xf32>
    %5 = vector.shape_cast %4 : vector<1x8x128xf32> to vector<8x128xf32>
    %6 = vector.shape_cast %3 : vector<8x128xf32> to vector<1x8x128xf32>
    tpu.vector_store %arg3[%c0_4, %c0_5, %c0_6], %6 {strides = array<i32>} : memref<1x8x128xf32, #tpu.memory_space<vmem>>, vector<1x8x128xf32>,
    return
  }
  func.func @transform_0(%arg0: i32) -> (i32, i32, i32) {
    %c0_i32 = arith.constant 0 : i32
    %c0_i32_0 = arith.constant 0 : i32
    %c0_i32_1 = arith.constant 0 : i32
    return %arg0, %c0_i32, %c0_i32_0 : i32, i32, i32
  }
  func.func @transform_1(%arg0: i32) -> (i32, i32) {
    %c0_i32 = arith.constant 0 : i32
    %c0_i32_0 = arith.constant 0 : i32
    %c0_i32_1 = arith.constant 0 : i32
    return %c0_i32, %c0_i32_0 : i32, i32
  }
  func.func @transform_2(%arg0: i32) -> (i32, i32, i32) {
    %c0_i32 = arith.constant 0 : i32
    %c0_i32_0 = arith.constant 0 : i32
    %c0_i32_1 = arith.constant 0 : i32
    return %arg0, %c0_i32, %c0_i32_0 : i32, i32, i32
  }
}

</mosaic_0001>

<llo_original>
// kernel: positional_encoding_forward.1
$region0: #{positional_encoding_forward.1}
  #allocation0 [shape = 'u32[]', space=smem, size = 0x4, offset = 0x4, fixed_abs, tag = 'smem constant byte address 0x4 - core index']
  #allocation1 [shape = 'u32[72,128]{1,0:T(1,128)}', space=vmem, size = 0x9000, scoped, tag = 'internal scratch']
  %s0 = inlined_call_operand.hbm [shape: f32[2,8,128], index: 0, kind: input, shape index: {}]
  %s1 = inlined_call_operand.vmem [shape: f32[8,128], index: 1, kind: input, shape index: {}]
  %s2 = inlined_call_operand.hbm [shape: f32[2,8,128], index: 2, kind: output, shape index: {}]
  %s3 = sld [smem:[#allocation0]]
  $region45: #{positional_encoding_forward.1} parent=0
    _
  %s5 = ssub.s32 1, %s3
  %s6 = scalar_select 0, %s5, %s3
  $region1: #{positional_encoding_forward.1} parent=0
    #allocation2 [shape = 'u8[8192]{0}', space=vmem, size = 0x2000, scoped, tag = 'input window, operand 0']
    #allocation3 [shape = 's32[2]{0}', space=sflag, size = 0x8, scoped, tag = 'scoped memory for positional_encoding_forward.1']
    #allocation4 [shape = 's32[2]{0}', space=sflag, size = 0x8, scoped, tag = 'scoped memory for positional_encoding_forward.1']
    #allocation5 [shape = 'u8[8192]{0}', space=vmem, size = 0x2000, scoped, tag = 'output window, operand 0']
    %7 = vsyncpa [#allocation3], 0
    %s8 = scalar_lea.sflag [#allocation3], 1
    %9 = vsyncpa %s8, 0
    %10 = vsyncpa [#allocation4], 0
    %s11 = scalar_lea.sflag [#allocation4], 1
    %12 = vsyncpa %s11, 0
    loop: start=0, step=1, limit=4
    $region2: #{positional_encoding_forward.1} parent=1 // loop_pre_header
      _
    $region3: #{positional_encoding_forward.1} parent=1 // loop_header
      %s14 = sphi 0, %s18
      %p15 = scmp.ge.s32.totalorder %s14, 4
      %s24 = sphi 0, %s26
      %s27 = sphi 0, %s24
      %s28 = sphi 0, %s27
      %s44 = sphi 0, %s28
      %s48 = sphi 0, %s48
      %s50 = sphi 0, %s48
      %s51 = sphi 0, %s50
      %s65 = sphi 0, %s51
      %s71 = sphi 0, %s73
      %s74 = sphi 0, %s71
      %s75 = sphi 0, %s74
      %s91 = sphi 0, %s75
    $region4: #{positional_encoding_forward.1} parent=1 // loop_header_branch
      %17 = sbr.rel (%p15) target = $region8
    $region5: #{positional_encoding_forward.1} parent=1 // loop_body
      %s19 = ssub.s32 %s14, 1
      %s20 = ssub.s32 %s14, 2
      %s21 = sadd.s32 %s14, 1
      %s22 = ssub.s32 %s14, %s21
      %p23 = scmp.eq.s32.totalorder %s22, 0
      %s25 = sadd.s32 %s24, 1
      %s26 = scalar_select %p23, %s24, %s25
      %p29 = pneg %p23
      %p30 = scmp.eq.s32.totalorder %s14, 1
      %p31 = por %p29, %p30
      %p32 = scmp.ne.s32.totalorder %s24, %s27
      %p33 = scmp.eq.s32.totalorder %s14, 0
      %p34 = por %p32, %p33
      %p35 = scmp.ne.s32.totalorder %s24, %s27
      %p36 = scmp.eq.s32.totalorder %s19, 1
      %p37 = por %p35, %p36
      %p38 = scmp.ne.s32.totalorder %s27, %s28
      %p39 = scmp.eq.s32.totalorder %s19, 0
      %p40 = por %p38, %p39
      %p41 = scmp.ne.s32.totalorder %s27, %s28
      %p42 = scmp.eq.s32.totalorder %s20, 1
      %p43 = por %p41, %p42
      %p45 = scmp.ne.s32.totalorder %s28, %s44
      %p46 = scmp.eq.s32.totalorder %s20, 0
      %p47 = por %p45, %p46
      %s49 = sadd.s32 %s48, 1
      %p52 = scmp.eq.s32.totalorder %s14, 1
      %p53 = scmp.ne.s32.totalorder %s48, %s50
      %p54 = scmp.eq.s32.totalorder %s14, 0
      %p55 = por %p53, %p54
      %p56 = scmp.ne.s32.totalorder %s48, %s50
      %p57 = scmp.eq.s32.totalorder %s19, 1
      %p58 = por %p56, %p57
      %p59 = scmp.ne.s32.totalorder %s50, %s51
      %p60 = scmp.eq.s32.totalorder %s19, 0
      %p61 = por %p59, %p60
      %p62 = scmp.ne.s32.totalorder %s50, %s51
      %p63 = scmp.eq.s32.totalorder %s20, 1
      %p64 = por %p62, %p63
      %p66 = scmp.ne.s32.totalorder %s51, %s65
      %p67 = scmp.eq.s32.totalorder %s20, 0
      %p68 = por %p66, %p67
      %s69 = ssub.s32 %s14, %s21
      %p70 = scmp.eq.s32.totalorder %s69, 0
      %s72 = sadd.s32 %s71, 1
      %s73 = scalar_select %p70, %s71, %s72
      %p76 = pneg %p70
      %p77 = scmp.eq.s32.totalorder %s14, 1
      %p78 = por %p76, %p77
      %p79 = scmp.ne.s32.totalorder %s71, %s74
      %p80 = scmp.eq.s32.totalorder %s14, 0
      %p81 = por %p79, %p80
      %p82 = scmp.ne.s32.totalorder %s71, %s74
      %p83 = scmp.eq.s32.totalorder %s19, 1
      %p84 = por %p82, %p83
      %p85 = scmp.ne.s32.totalorder %s74, %s75
      %p86 = scmp.eq.s32.totalorder %s19, 0
      %p87 = por %p85, %p86
      %p88 = scmp.ne.s32.totalorder %s74, %s75
      %p89 = scmp.eq.s32.totalorder %s20, 1
      %p90 = por %p88, %p89
      %p92 = scmp.ne.s32.totalorder %s75, %s91
      %p93 = scmp.eq.s32.totalorder %s20, 0
      %p94 = por %p92, %p93
      %p95 = scmp.le.s32.totalorder 1, %s14
      %p96 = scmp.lt.s32.totalorder %s14, 3
      %p97 = pnand %p95, %p96
      %p98 = pneg %p97
      // Predicated region
      $region9: #{positional_encoding_forward.1} parent=5 // pred_check
        _
      $region10: #{positional_encoding_forward.1} parent=5 // pred_check_branch
        %100 = sbr.rel (%p97) target = $region12
      $region11: #{positional_encoding_forward.1} parent=5 // pred_region
        %s101 = ssub.s32 %s14, 1
        // Predicated region
        $region13: #{positional_encoding_forward.1} parent=11 // pred_check
          %p102 = pneg %p61
        $region14: #{positional_encoding_forward.1} parent=11 // pred_check_branch
          %104 = sbr.rel (%p102) target = $region16
        $region15: #{positional_encoding_forward.1} parent=11 // pred_region
          _
        $region16: #{positional_encoding_forward.1} parent=11 // pred_fallthru
          _
      $region12: #{positional_encoding_forward.1} parent=5 // pred_fallthru
        _
      %p105 = scmp.lt.s32.totalorder %s14, 2
      // Predicated region
      $region17: #{positional_encoding_forward.1} parent=5 // pred_check
        %p106 = pneg %p105
      $region18: #{positional_encoding_forward.1} parent=5 // pred_check_branch
        %108 = sbr.rel (%p106) target = $region20
      $region19: #{positional_encoding_forward.1} parent=5 // pred_region
        // Predicated region
        $region21: #{positional_encoding_forward.1} parent=19 // pred_check
          %p109 = pneg %p34
        $region22: #{positional_encoding_forward.1} parent=19 // pred_check_branch
          %111 = sbr.rel (%p109) target = $region24
        $region23: #{positional_encoding_forward.1} parent=19 // pred_region
          %s112 = sand.u32 %s24, 1
          %s113 = scalar_lea.sflag [#allocation3], %s112
          %s114 = sand.u32 %s24, 1
          %s115 = smul.addr %s114, 8
          %s116 = scalar_lea.vmem [#allocation2], %s115
          %118 = vsyncadd %s113, 0
          %s119 = smul.addr %s14, 8
          %s120 = scalar_lea.hbm %s0, %s119
          %s122 = sshll.u32 %s120, 4
          %s123 = int_to_ptr.hbm [resolvable:$true] %s122
          %s124 = sshll.u32 %s116, 4
          %s125 = int_to_ptr.vmem [resolvable:$true] %s124
          %127 = dma.hbm_to_vmem [thread:$0]  %s123, 128, %s125, %s113
        $region24: #{positional_encoding_forward.1} parent=19 // pred_fallthru
          _
      $region20: #{positional_encoding_forward.1} parent=5 // pred_fallthru
        _
      %p128 = scmp.le.s32.totalorder 1, %s14
      %p129 = scmp.lt.s32.totalorder %s14, 3
      %p130 = pnand %p128, %p129
      %p131 = pneg %p130
      // Predicated region
      $region25: #{positional_encoding_forward.1} parent=5 // pred_check
        _
      $region26: #{positional_encoding_forward.1} parent=5 // pred_check_branch
        %133 = sbr.rel (%p130) target = $region28
      $region27: #{positional_encoding_forward.1} parent=5 // pred_region
        %s134 = ssub.s32 %s14, 1
        %s135 = sand.u32 %s27, 1
        %s136 = scalar_lea.sflag [#allocation3], %s135
        %s137 = sand.u32 %s27, 1
        %s138 = smul.addr %s137, 8
        %s139 = scalar_lea.vmem [#allocation2], %s138
        // Predicated region
        $region29: #{positional_encoding_forward.1} parent=27 // pred_check
          %p140 = pneg %p40
        $region30: #{positional_encoding_forward.1} parent=27 // pred_check_branch
          %142 = sbr.rel (%p140) target = $region32
        $region31: #{positional_encoding_forward.1} parent=27 // pred_region
          %144 = dma.done %s136, 128
        $region32: #{positional_encoding_forward.1} parent=27 // pred_fallthru
          _
        %s145 = sand.u32 %s27, 1
        %s146 = scalar_lea.sflag [#allocation3], %s145
        %s147 = sand.u32 %s27, 1
        %s148 = smul.addr %s147, 8
        %s149 = scalar_lea.vmem [#allocation2], %s148
        %p150 = pneg %p40
        %p151 = pneg %p37
        %p152 = pneg %p61
        %p153 = pneg %p58
        %p154 = pneg %p87
        %p155 = pneg %p84
        %s156 = sand.u32 %s74, 1
        %s157 = scalar_lea.sflag [#allocation4], %s156
        %s158 = sand.u32 %s74, 1
        %s159 = smul.addr %s158, 8
        %s160 = scalar_lea.vmem [#allocation5], %s159
        %v161 = vld [vmem:[%s139] sm:$0xff]
        %v162 = vld [vmem:[%s1] sm:$0xff]
        %v163 = vadd.f32 %v161, %v162
        %164 = vst [vmem:[%s160] sm:$0xff] %v163
        %s165 = sand.u32 %s74, 1
        %s166 = scalar_lea.sflag [#allocation4], %s165
        %s167 = sand.u32 %s74, 1
        %s168 = smul.addr %s167, 8
        %s169 = scalar_lea.vmem [#allocation5], %s168
        // Predicated region
        $region33: #{positional_encoding_forward.1} parent=27 // pred_check
          %p170 = pneg %p84
        $region34: #{positional_encoding_forward.1} parent=27 // pred_check_branch
          %172 = sbr.rel (%p170) target = $region36
        $region35: #{positional_encoding_forward.1} parent=27 // pred_region
          %174 = vsyncadd %s166, 0
          %s175 = smul.addr %s19, 8
          %s176 = scalar_lea.hbm %s2, %s175
          %s178 = sshll.u32 %s169, 4
          %s179 = int_to_ptr.vmem [resolvable:$true] %s178
          %s180 = sshll.u32 %s176, 4
          %s181 = int_to_ptr.hbm [resolvable:$true] %s180
          %183 = dma.vmem_to_hbm [thread:$0]  %s179, 128, %s181, %s166
        $region36: #{positional_encoding_forward.1} parent=27 // pred_fallthru
          _
      $region28: #{positional_encoding_forward.1} parent=5 // pred_fallthru
        _
      %p184 = scmp.le.s32.totalorder 2, %s14
      // Predicated region
      $region37: #{positional_encoding_forward.1} parent=5 // pred_check
        %p185 = pneg %p184
      $region38: #{positional_encoding_forward.1} parent=5 // pred_check_branch
        %187 = sbr.rel (%p185) target = $region40
      $region39: #{positional_encoding_forward.1} parent=5 // pred_region
        %s188 = ssub.s32 %s14, 2
        // Predicated region
        $region41: #{positional_encoding_forward.1} parent=39 // pred_check
          %p189 = pneg %p90
        $region42: #{positional_encoding_forward.1} parent=39 // pred_check_branch
          %191 = sbr.rel (%p189) target = $region44
        $region43: #{positional_encoding_forward.1} parent=39 // pred_region
          %s192 = sand.u32 %s75, 1
          %s193 = scalar_lea.sflag [#allocation4], %s192
          %s194 = sand.u32 %s75, 1
          %s195 = smul.addr %s194, 8
          %s196 = scalar_lea.vmem [#allocation5], %s195
          %198 = dma.done %s193, 128
        $region44: #{positional_encoding_forward.1} parent=39 // pred_fallthru
          _
      $region40: #{positional_encoding_forward.1} parent=5 // pred_fallthru
        _
    $region6: #{positional_encoding_forward.1} parent=1 // loop_footer
      %s18 = sadd.s32 1, %s14
    $region7: #{positional_encoding_forward.1} parent=1 // loop_footer_branch
      %13 = sbr.rel target = $region3
    $region8: #{positional_encoding_forward.1} parent=1 // loop_exit
      _
    %199 = vsyncpa [#allocation3], 1
    %s200 = scalar_lea.sflag [#allocation3], 1
    %201 = vsyncpa %s200, 1
    %202 = vsyncpa [#allocation4], 1
    %s203 = scalar_lea.sflag [#allocation4], 1
    %204 = vsyncpa %s203, 1

</llo_original>
